<compile_context>
chip_gen: v7x
topology: tpu7x:2x2x1
jax: 0.10.0
libtpu: 0.0.40
codegen_flags: <defaults>
</compile_context>

<pallas_src>
import jax
import jax.numpy as jnp
from jax.experimental import pallas as pl
from jax.experimental.pallas import tpu as pltpu

LEAKY_SLOPE = 0.01  # PyTorch nn.LeakyReLU default negative_slope


# ----------------------------------------------------------------------------
# Fused kernel: conv-encoder hot path + projector MLP.
#   acts  = relu(Wc @ patches)        per-batch, lane dim = H*W (256)
#   emb   = mean_{HW}(acts)           (B, F) lane reduction
#   h1    = lrelu(emb @ W1^T)         (pre-transposed: emb @ W1t)
#   h2    = lrelu(h1  @ W2^T)
#   y     = lrelu(sum(h2 * w3, -1) + b3)
# ----------------------------------------------------------------------------
def res_est_kernel(p_ref, wc_ref, w1t_ref, w2t_ref, w3_ref, b3_ref, o_ref):
    B, CK, HW = p_ref.shape
    F = wc_ref.shape[0]

    def lrelu(v):
        return jnp.where(v >= 0, v, LEAKY_SLOPE * v)

    # --- encoder: conv-as-matmul, batched, HW on the lane axis -------------
    wcb = jnp.broadcast_to(wc_ref[...][None], (B, F, CK))        # (B, F, CK)
    acts = jnp.einsum('bfk,bkh->bfh', wcb, p_ref[...],
                      preferred_element_type=jnp.float32)         # (B, F, HW)
    acts = jnp.maximum(acts, 0.0)                                 # ReLU
    emb = jnp.mean(acts, axis=-1)                                 # (B, F)

    # --- projector (weights pre-transposed to (in, out)) -------------------
    h1 = lrelu(jnp.dot(emb, w1t_ref[...],
                       preferred_element_type=jnp.float32))       # (B, F)
    h2 = lrelu(jnp.dot(h1, w2t_ref[...],
                       preferred_element_type=jnp.float32))       # (B, F)
    # Linear(F, 1, bias=True) as elementwise mul + lane sum (no N=1 matmul).
    y = jnp.sum(h2 * w3_ref[...], axis=-1, keepdims=True) + b3_ref[...]
    o_ref[...] = lrelu(y)                                         # (B, 1)


def res_est_forward(x, params):
    """x: (B, C, H, W) f32 NCHW. Returns (B, 1) f32."""
    B, C, H, W = x.shape
    F = params["w_conv"].shape[0]
    k = 3

    patches = im2col(x, k=k, pad=1)                  # (B, C*K*K, H*W)
    wc = params["w_conv"].reshape(F, -1)             # (F, C*K*K)  c-major/kk-minor
    w1t = params["w1"].T                             # (F_in, F_out)
    w2t = params["w2"].T
    w3 = params["w3"]                                # (1, F)
    b3 = params["b3"].reshape(1, 1)                  # (1, 1)

    # Single fused call; all operands fit trivially in VMEM (< 100 KiB),
    # so whole-array (default) blocks and no grid are used.
    return pl.pallas_call(
        res_est_kernel,
        out_shape=jax.ShapeDtypeStruct((B, 1), jnp.float32),
    )(patches, wc, w1t, w2t, w3, b3)


# ----------------------------------------------------------------------------
# Glue: im2col (PyTorch ordering: channel-major, (kh, kw)-minor), kept
# lane-dense: last dim is H*W.
# ----------------------------------------------------------------------------
def im2col(x, k, pad):
    B, C, H, W = x.shape
    xp = jnp.pad(x, ((0, 0), (0, 0), (pad, pad), (pad, pad)))
    cols = [xp[:, :, i:i + H, j:j + W] for i in range(k) for j in range(k)]
    patches = jnp.stack(cols, axis=2)                # (B, C, K*K, H, W)
    return patches.reshape(B, C * k * k, H * W)      # (B, C*K*K, H*W)


if __name__ == "__main__":
    # Small shapes: batch=2, in-channels=4, spatial=16x16, n_features=32
    B, C, H, W = 2, 4, 16, 16
    F = 32
    K = 3

    key = jax.random.PRNGKey(0)
    kx, kc, k1, k2, k3, kb = jax.random.split(key, 6)

    x = jax.random.normal(kx, (B, C, H, W), dtype=jnp.float32)

    params = {
        # synthetic encoder conv weight (F, C, K, K), no bias
        "w_conv": 0.1 * jax.random.normal(kc, (F, C, K, K), dtype=jnp.float32),
        # projector weights, PyTorch Linear convention (out, in)
        "w1": 0.1 * jax.random.normal(k1, (F, F), dtype=jnp.float32),
        "w2": 0.1 * jax.random.normal(k2, (F, F), dtype=jnp.float32),
        "w3": 0.1 * jax.random.normal(k3, (1, F), dtype=jnp.float32),
        "b3": 0.1 * jax.random.normal(kb, (1,), dtype=jnp.float32),
    }

    y = res_est_forward(x, params)
    jax.block_until_ready(y)

    # Pure-JAX reference of the full forward pass (fp32, same math order).
    def lrelu(v):
        return jnp.where(v >= 0, v, LEAKY_SLOPE * v)

    patches_ref = im2col(x, K, 1)                                # (B, CK, HW)
    wflat = params["w_conv"].reshape(F, -1)                      # (F, CK)
    acts_ref = jnp.maximum(
        jnp.einsum('fk,bkh->bfh', wflat, patches_ref), 0.0)      # (B, F, HW)
    emb_ref = jnp.mean(acts_ref, axis=-1)                        # (B, F)
    h1 = lrelu(emb_ref @ params["w1"].T)
    h2 = lrelu(h1 @ params["w2"].T)
    y_ref = lrelu(h2 @ params["w3"].T + params["b3"])

    assert y.shape == (B, 1)
    assert jnp.allclose(y, y_ref, atol=1e-5, rtol=1e-5)
    print("KERNEL_OK")
</pallas_src>

<mosaic_0001>
module attributes {stable_mosaic.version = 11 : i64} {
  func.func @res_est_kernel(%arg0: memref<2x36x256xf32, #tpu.memory_space<vmem>>, %arg1: memref<32x36xf32, #tpu.memory_space<vmem>>, %arg2: memref<32x32xf32, #tpu.memory_space<vmem>>, %arg3: memref<32x32xf32, #tpu.memory_space<vmem>>, %arg4: memref<1x32xf32, #tpu.memory_space<vmem>>, %arg5: memref<1x1xf32, #tpu.memory_space<vmem>>, %arg6: memref<2x1xf32, #tpu.memory_space<vmem>>) attributes {dimension_semantics = [], scalar_prefetch = 0 : i64, scratch_operands = 0 : i64, tpu.core_type = #tpu.core_type<tc>} {
    %c0 = arith.constant 0 : index
    %c0_0 = arith.constant 0 : index
    %0 = vector.load %arg1[%c0, %c0_0] : memref<32x36xf32, #tpu.memory_space<vmem>>, vector<32x36xf32>
    %1 = vector.shape_cast %0 : vector<32x36xf32> to vector<1x32x36xf32>
    %2 = vector.shape_cast %1 : vector<1x32x36xf32> to vector<1x32x36xf32>
    %3 = vector.broadcast %2 : vector<1x32x36xf32> to vector<2x32x36xf32>
    %c0_1 = arith.constant 0 : index
    %c0_2 = arith.constant 0 : index
    %c0_3 = arith.constant 0 : index
    %4 = vector.load %arg0[%c0_1, %c0_2, %c0_3] : memref<2x36x256xf32, #tpu.memory_space<vmem>>, vector<2x36x256xf32>
    "tpu.trace_start"() <{level = 10 : i32, message = "bfk,bkh->bfh"}> : () -> ()
    %cst = arith.constant dense<0.000000e+00> : vector<2x32x256xf32>
    %5 = tpu.matmul %3, %4, %cst {dimension_numbers = #tpu.dot_dimension_numbers<[2], [1], [1], [2], [0, 0, 0, 1, 1, 2], [0], [0]>} : vector<2x32x36xf32>, vector<2x36x256xf32>, vector<2x32x256xf32> -> vector<2x32x256xf32>
    "tpu.trace_stop"() : () -> ()
    %cst_4 = arith.constant 0.000000e+00 : f32
    %6 = vector.broadcast %cst_4 : f32 to vector<2x32x256xf32>
    %7 = arith.maximumf %5, %6 : vector<2x32x256xf32>
    %cst_5 = arith.constant dense<0.000000e+00> : vector<2x32xf32>
    %8 = vector.multi_reduction <add>, %7, %cst_5 [2] : vector<2x32x256xf32> to vector<2x32xf32>
    %cst_6 = arith.constant 2.560000e+02 : f32
    %9 = vector.broadcast %cst_6 : f32 to vector<2x32xf32>
    %10 = arith.divf %8, %9 : vector<2x32xf32>
    %c0_7 = arith.constant 0 : index
    %c0_8 = arith.constant 0 : index
    %11 = vector.load %arg2[%c0_7, %c0_8] : memref<32x32xf32, #tpu.memory_space<vmem>>, vector<32x32xf32>
    %cst_9 = arith.constant dense<0.000000e+00> : vector<2x32xf32>
    %12 = tpu.matmul %10, %11, %cst_9 {dimension_numbers = #tpu.dot_dimension_numbers<[1], [0], [0], [1], [0, 0, 1, 1], [], []>} : vector<2x32xf32>, vector<32x32xf32>, vector<2x32xf32> -> vector<2x32xf32>
    %cst_10 = arith.constant 0.000000e+00 : f32
    %13 = vector.broadcast %cst_10 : f32 to vector<2x32xf32>
    %14 = arith.cmpf oge, %12, %13 : vector<2x32xf32>
    %cst_11 = arith.constant 0.00999999977 : f32
    %15 = vector.broadcast %cst_11 : f32 to vector<2x32xf32>
    %16 = arith.mulf %15, %12 : vector<2x32xf32>
    %17 = arith.select %14, %12, %16 : vector<2x32xi1>, vector<2x32xf32>
    %c0_12 = arith.constant 0 : index
    %c0_13 = arith.constant 0 : index
    %18 = vector.load %arg3[%c0_12, %c0_13] : memref<32x32xf32, #tpu.memory_space<vmem>>, vector<32x32xf32>
    %cst_14 = arith.constant dense<0.000000e+00> : vector<2x32xf32>
    %19 = tpu.matmul %17, %18, %cst_14 {dimension_numbers = #tpu.dot_dimension_numbers<[1], [0], [0], [1], [0, 0, 1, 1], [], []>} : vector<2x32xf32>, vector<32x32xf32>, vector<2x32xf32> -> vector<2x32xf32>
    %cst_15 = arith.constant 0.000000e+00 : f32
    %20 = vector.broadcast %cst_15 : f32 to vector<2x32xf32>
    %21 = arith.cmpf oge, %19, %20 : vector<2x32xf32>
    %cst_16 = arith.constant 0.00999999977 : f32
    %22 = vector.broadcast %cst_16 : f32 to vector<2x32xf32>
    %23 = arith.mulf %22, %19 : vector<2x32xf32>
    %24 = arith.select %21, %19, %23 : vector<2x32xi1>, vector<2x32xf32>
    %c0_17 = arith.constant 0 : index
    %c0_18 = arith.constant 0 : index
    %25 = vector.load %arg4[%c0_17, %c0_18] : memref<1x32xf32, #tpu.memory_space<vmem>>, vector<1x32xf32>
    %26 = vector.broadcast %25 : vector<1x32xf32> to vector<2x32xf32>
    %27 = arith.mulf %24, %26 : vector<2x32xf32>
    %cst_19 = arith.constant dense<0.000000e+00> : vector<2xf32>
    %28 = vector.multi_reduction <add>, %27, %cst_19 [1] : vector<2x32xf32> to vector<2xf32>
    %29 = vector.shape_cast %28 : vector<2xf32> to vector<2x1xf32>
    %c0_20 = arith.constant 0 : index
    %c0_21 = arith.constant 0 : index
    %30 = vector.load %arg5[%c0_20, %c0_21] : memref<1x1xf32, #tpu.memory_space<vmem>>, vector<1x1xf32>
    %31 = vector.broadcast %30 : vector<1x1xf32> to vector<2x1xf32>
    %32 = arith.addf %29, %31 : vector<2x1xf32>
    %cst_22 = arith.constant 0.000000e+00 : f32
    %33 = vector.broadcast %cst_22 : f32 to vector<2x1xf32>
    %34 = arith.cmpf oge, %32, %33 : vector<2x1xf32>
    %cst_23 = arith.constant 0.00999999977 : f32
    %35 = vector.broadcast %cst_23 : f32 to vector<2x1xf32>
    %36 = arith.mulf %35, %32 : vector<2x1xf32>
    %37 = arith.select %34, %32, %36 : vector<2x1xi1>, vector<2x1xf32>
    %c0_24 = arith.constant 0 : index
    %c0_25 = arith.constant 0 : index
    %38 = vector.load %arg6[%c0_24, %c0_25] : memref<2x1xf32, #tpu.memory_space<vmem>>, vector<2x1xf32>
    tpu.vector_store %arg6[%c0_24, %c0_25], %37 {strides = array<i32>} : memref<2x1xf32, #tpu.memory_space<vmem>>, vector<2x1xf32>,
    return
  }
}

</mosaic_0001>

<llo_original>
// kernel: tpu_custom_call.1
$region0: #{tpu_custom_call.1}
  #allocation0 [shape = 'u32[]', space=smem, size = 0x4, offset = 0x4, fixed_abs, tag = 'smem constant byte address 0x4 - core index']
  #allocation1 [shape = 'u32[144,128]{1,0:T(1,128)}', space=vmem, size = 0x12000, scoped, tag = 'internal scratch']
  #allocation2 [shape = 'f32[1,1]{1,0:T(1,128)S(1)}', space=vmem, size = 0x200, scoped, tag = 'scoped memory for tpu_custom_call.1']
  %s0 = inlined_call_operand.vmem [shape: f32[2,36,256], index: 0, kind: input, shape index: {}]
  %s1 = inlined_call_operand.vmem [shape: f32[32,36], index: 1, kind: input, shape index: {}]
  %s2 = inlined_call_operand.vmem [shape: f32[32,32], index: 2, kind: input, shape index: {}]
  %s3 = inlined_call_operand.vmem [shape: f32[32,32], index: 3, kind: input, shape index: {}]
  %s4 = inlined_call_operand.vmem [shape: f32[1,32], index: 4, kind: input, shape index: {}]
  %s5 = inlined_call_operand.<no memory space> [shape: f32[1,1], index: 5, kind: input, shape index: {}]
  %s6 = inlined_call_operand.vmem [shape: f32[2,1], index: 6, kind: output, shape index: {}]
  %s7 = sld [smem:[#allocation0]]
  $region34: #{tpu_custom_call.1} parent=0
    _
  %s9 = ssub.s32 1, %s7
  %s10 = scalar_select 0, %s9, %s7
  %v11 = vstv %s5
  %12 = vst [vmem:[#allocation2] sm:$0x1] %v11
  // Predicated region
  $region2: #{tpu_custom_call.1} parent=0 // pred_check
    _
  $region3: #{tpu_custom_call.1} parent=0 // pred_check_branch
    %14 = sbr.rel (0) target = $region5
  $region4: #{tpu_custom_call.1} parent=0 // pred_region
    _
  $region5: #{tpu_custom_call.1} parent=0 // pred_fallthru
    _
  // Predicated region
  $region6: #{tpu_custom_call.1} parent=0 // pred_check
    _
  $region7: #{tpu_custom_call.1} parent=0 // pred_check_branch
    %16 = sbr.rel (0) target = $region9
  $region8: #{tpu_custom_call.1} parent=0 // pred_region
    _
  $region9: #{tpu_custom_call.1} parent=0 // pred_fallthru
    _
  // Predicated region
  $region10: #{tpu_custom_call.1} parent=0 // pred_check
    _
  $region11: #{tpu_custom_call.1} parent=0 // pred_check_branch
    %18 = sbr.rel (0) target = $region13
  $region12: #{tpu_custom_call.1} parent=0 // pred_region
    _
  $region13: #{tpu_custom_call.1} parent=0 // pred_fallthru
    _
  // Predicated region
  $region14: #{tpu_custom_call.1} parent=0 // pred_check
    _
  $region15: #{tpu_custom_call.1} parent=0 // pred_check_branch
    %20 = sbr.rel (0) target = $region17
  $region16: #{tpu_custom_call.1} parent=0 // pred_region
    _
  $region17: #{tpu_custom_call.1} parent=0 // pred_fallthru
    _
  // Predicated region
  $region18: #{tpu_custom_call.1} parent=0 // pred_check
    _
  $region19: #{tpu_custom_call.1} parent=0 // pred_check_branch
    %22 = sbr.rel (0) target = $region21
  $region20: #{tpu_custom_call.1} parent=0 // pred_region
    _
  $region21: #{tpu_custom_call.1} parent=0 // pred_fallthru
    _
  // Predicated region
  $region22: #{tpu_custom_call.1} parent=0 // pred_check
    _
  $region23: #{tpu_custom_call.1} parent=0 // pred_check_branch
    %24 = sbr.rel (0) target = $region25
  $region24: #{tpu_custom_call.1} parent=0 // pred_region
    _
  $region25: #{tpu_custom_call.1} parent=0 // pred_fallthru
    _
  %v25 = vld [vmem:[%s1] sm:$0xff]
  %v26 = vld [vmem:[%s1 + $0x8] sm:$0xff]
  %v27 = vld [vmem:[%s1 + $0x10] sm:$0xff]
  %v28 = vld [vmem:[%s1 + $0x18] sm:$0xff]
  %v29 = vld [vmem:[%s0] sm:$0xff]
  %v30 = vld [vmem:[%s0 + $0x8] sm:$0xff]
  %v31 = vld [vmem:[%s0 + $0x10] sm:$0xff]
  %v32 = vld [vmem:[%s0 + $0x18] sm:$0xff]
  %v33 = vld [vmem:[%s0 + $0x20] sm:$0xff]
  %v34 = vld [vmem:[%s0 + $0x28] sm:$0xff]
  %v35 = vld [vmem:[%s0 + $0x30] sm:$0xff]
  %v36 = vld [vmem:[%s0 + $0x38] sm:$0xff]
  %v37 = vld [vmem:[%s0 + $0x40] sm:$0xf]
  %v38 = vld [vmem:[%s0 + $0x48] sm:$0xf]
  %v39 = vld [vmem:[%s0 + $0x50] sm:$0xff]
  %v40 = vld [vmem:[%s0 + $0x58] sm:$0xff]
  %v41 = vld [vmem:[%s0 + $0x60] sm:$0xff]
  %v42 = vld [vmem:[%s0 + $0x68] sm:$0xff]
  %v43 = vld [vmem:[%s0 + $0x70] sm:$0xff]
  %v44 = vld [vmem:[%s0 + $0x78] sm:$0xff]
  %v45 = vld [vmem:[%s0 + $0x80] sm:$0xff]
  %v46 = vld [vmem:[%s0 + $0x88] sm:$0xff]
  %v47 = vld [vmem:[%s0 + $0x90] sm:$0xf]
  %v48 = vld [vmem:[%s0 + $0x98] sm:$0xf]
  %vm49 = vcmask 293888
  %v51 = vsel %vm49, %v25, 0
  %v54 = vsel %vm49, %v26, 0
  %v57 = vsel %vm49, %v27, 0
  %v60 = vsel %vm49, %v28, 0
  %vm62 = vcmask 1043456
  %v64 = vsel %vm62, %v37, 0
  %v67 = vsel %vm62, %v38, 0
  %69 = vmatprep.subr.mxu0 %v30
  %70 = vmatpush1.msra.mxu0 %v29
  %71 = vmatprep.subr.mxu0 %v32
  %72 = vmatpush1.msra.mxu0 %v31
  %73 = vmatprep.subr.mxu0 %v34
  %74 = vmatpush1.msra.mxu0 %v33
  %75 = vmatprep.subr.mxu0 %v36
  %76 = vmatpush1.msra.mxu0 %v35
  %77 = vmatprep.subr.mxu0 %v67
  %78 = vmatpush1.msra.mxu0 %v64
  %79 = vmatprep.subr.mxu0 0.0
  %80 = vmatpush1.msra.mxu0 0.0
  %81 = vmatprep.subr.mxu0 0.0
  %82 = vmatpush1.msra.mxu0 0.0
  %83 = vmatprep.subr.mxu0 0.0
  %84 = vmatpush1.msra.mxu0 0.0
  %85 = vmatprep.subr.mxu0 0.0
  %86 = vmatpush1.msra.mxu0 0.0
  %87 = vmatprep.subr.mxu0 0.0
  %88 = vmatpush1.msra.mxu0 0.0
  %89 = vmatprep.subr.mxu0 0.0
  %90 = vmatpush1.msra.mxu0 0.0
  %91 = vmatprep.subr.mxu0 0.0
  %92 = vmatpush1.msra.mxu0 0.0
  %93 = vmatprep.subr.mxu0 0.0
  %94 = vmatpush1.msra.mxu0 0.0
  %95 = vmatprep.subr.mxu0 0.0
  %96 = vmatpush1.msra.mxu0 0.0
  %97 = vmatprep.subr.mxu0 0.0
  %98 = vmatpush1.msra.mxu0 0.0
  %99 = vmatprep.subr.mxu0 0.0
  %100 = vmatpush1.msra.mxu0 0.0
  %101 = vmatprep.subr.mxu0 0.0
  %102 = vmatpush1.msra.mxu0 0.0
  %103 = vmatprep.subr.mxu0 0.0
  %104 = vmatpush1.msra.mxu0 0.0
  %105 = vmatprep.subr.mxu0 0.0
  %106 = vmatpush1.msra.mxu0 0.0
  %107 = vmatprep.subr.mxu0 0.0
  %108 = vmatpush1.msra.mxu0 0.0
  %109 = vmatprep.subr.mxu0 0.0
  %110 = vmatpush1.msra.mxu0 0.0
  %111 = vmatprep.subr.mxu0 0.0
  %112 = vmatpush1.msra.mxu0 0.0
  %113 = vmatprep.subr.mxu0 0.0
  %114 = vmatpush1.msra.mxu0 0.0
  %115 = vmatprep.subr.mxu0 0.0
  %116 = vmatpush1.msra.mxu0 0.0
  %117 = vmatprep.subr.mxu0 0.0
  %118 = vmatpush1.msra.mxu0 0.0
  %119 = vmatprep.subr.mxu0 0.0
  %120 = vmatpush1.msra.mxu0 0.0
  %121 = vmatprep.subr.mxu0 0.0
  %122 = vmatpush1.msra.mxu0 0.0
  %123 = vmatprep.subr.mxu0 0.0
  %124 = vmatpush1.msra.mxu0 0.0
  %125 = vmatprep.subr.mxu0 0.0
  %126 = vmatpush1.msra.mxu0 0.0
  %127 = vmatprep.subr.mxu0 0.0
  %128 = vmatpush1.msra.mxu0 0.0
  %129 = vmatprep.subr.mxu0 0.0
  %130 = vmatpush1.msra.mxu0 0.0
  %131 = vmatprep.subr.mxu0 0.0
  %132 = vmatpush1.msra.mxu0 0.0
  %133 = vmatprep.mubr.f32.mxu0 0.0
  %134 = vmatmul.mubr.f32.gmra.mrb[0].mxu0 %v51
  %v135 = vpop.f32.mrb[0].mxu0
  %v136 = vadd.f32 0.0, %v135
  %v137 = vpop.f32.mrb[0].mxu0
  %v138 = vadd.f32 0.0, %v137
  %139 = vmatprep.mubr.f32.mxu0 0.0
  %140 = vmatmul.mubr.f32.gmra.mrb[0].mxu0 %v54
  %v141 = vpop.f32.mrb[0].mxu0
  %v142 = vadd.f32 0.0, %v141
  %v143 = vpop.f32.mrb[0].mxu0
  %v144 = vadd.f32 0.0, %v143
  %145 = vmatprep.mubr.f32.mxu0 0.0
  %146 = vmatmul.mubr.f32.gmra.mrb[0].mxu0 %v57
  %v147 = vpop.f32.mrb[0].mxu0
  %v148 = vadd.f32 0.0, %v147
  %v149 = vpop.f32.mrb[0].mxu0
  %v150 = vadd.f32 0.0, %v149
  %151 = vmatprep.mubr.f32.mxu0 0.0
  %152 = vmatmul.mubr.f32.gmra.mrb[0].mxu0 %v60
  %v153 = vpop.f32.mrb[0].mxu0
  %v154 = vadd.f32 0.0, %v153
  %v155 = vpop.f32.mrb[0].mxu0
  %v156 = vadd.f32 0.0, %v155
  %157 = vdwg.mxu0
  %v159 = vsel %vm62, %v47, 0
  %v162 = vsel %vm62, %v48, 0
  %164 = vmatprep.subr.mxu0 %v40
  %165 = vmatpush1.msra.mxu0 %v39
  %166 = vmatprep.subr.mxu0 %v42
  %167 = vmatpush1.msra.mxu0 %v41
  %168 = vmatprep.subr.mxu0 %v44
  %169 = vmatpush1.msra.mxu0 %v43
  %170 = vmatprep.subr.mxu0 %v46
  %171 = vmatpush1.msra.mxu0 %v45
  %172 = vmatprep.subr.mxu0 %v162
  %173 = vmatpush1.msra.mxu0 %v159
  %174 = vmatprep.subr.mxu0 0.0
  %175 = vmatpush1.msra.mxu0 0.0
  %176 = vmatprep.subr.mxu0 0.0
  %177 = vmatpush1.msra.mxu0 0.0
  %178 = vmatprep.subr.mxu0 0.0
  %179 = vmatpush1.msra.mxu0 0.0
  %180 = vmatprep.subr.mxu0 0.0
  %181 = vmatpush1.msra.mxu0 0.0
  %182 = vmatprep.subr.mxu0 0.0
  %183 = vmatpush1.msra.mxu0 0.0
  %184 = vmatprep.subr.mxu0 0.0
  %185 = vmatpush1.msra.mxu0 0.0
  %186 = vmatprep.subr.mxu0 0.0
  %187 = vmatpush1.msra.mxu0 0.0
  %188 = vmatprep.subr.mxu0 0.0
  %189 = vmatpush1.msra.mxu0 0.0
  %190 = vmatprep.subr.mxu0 0.0
  %191 = vmatpush1.msra.mxu0 0.0
  %192 = vmatprep.subr.mxu0 0.0
  %193 = vmatpush1.msra.mxu0 0.0
  %194 = vmatprep.subr.mxu0 0.0
  %195 = vmatpush1.msra.mxu0 0.0
  %196 = vmatprep.subr.mxu0 0.0
  %197 = vmatpush1.msra.mxu0 0.0
  %198 = vmatprep.subr.mxu0 0.0
  %199 = vmatpush1.msra.mxu0 0.0
  %200 = vmatprep.subr.mxu0 0.0
  %201 = vmatpush1.msra.mxu0 0.0
  %202 = vmatprep.subr.mxu0 0.0
  %203 = vmatpush1.msra.mxu0 0.0
  %204 = vmatprep.subr.mxu0 0.0
  %205 = vmatpush1.msra.mxu0 0.0
  %206 = vmatprep.subr.mxu0 0.0
  %207 = vmatpush1.msra.mxu0 0.0
  %208 = vmatprep.subr.mxu0 0.0
  %209 = vmatpush1.msra.mxu0 0.0
  %210 = vmatprep.subr.mxu0 0.0
  %211 = vmatpush1.msra.mxu0 0.0
  %212 = vmatprep.subr.mxu0 0.0
  %213 = vmatpush1.msra.mxu0 0.0
  %214 = vmatprep.subr.mxu0 0.0
  %215 = vmatpush1.msra.mxu0 0.0
  %216 = vmatprep.subr.mxu0 0.0
  %217 = vmatpush1.msra.mxu0 0.0
  %218 = vmatprep.subr.mxu0 0.0
  %219 = vmatpush1.msra.mxu0 0.0
  %220 = vmatprep.subr.mxu0 0.0
  %221 = vmatpush1.msra.mxu0 0.0
  %222 = vmatprep.subr.mxu0 0.0
  %223 = vmatpush1.msra.mxu0 0.0
  %224 = vmatprep.subr.mxu0 0.0
  %225 = vmatpush1.msra.mxu0 0.0
  %226 = vmatprep.subr.mxu0 0.0
  %227 = vmatpush1.msra.mxu0 0.0
  %228 = vmatprep.mubr.f32.mxu0 0.0
  %229 = vmatmul.mubr.f32.gmra.mrb[0].mxu0 %v51
  %v230 = vpop.f32.mrb[0].mxu0
  %v231 = vadd.f32 0.0, %v230
  %v232 = vpop.f32.mrb[0].mxu0
  %v233 = vadd.f32 0.0, %v232
  %234 = vmatprep.mubr.f32.mxu0 0.0
  %235 = vmatmul.mubr.f32.gmra.mrb[0].mxu0 %v54
  %v236 = vpop.f32.mrb[0].mxu0
  %v237 = vadd.f32 0.0, %v236
  %v238 = vpop.f32.mrb[0].mxu0
  %v239 = vadd.f32 0.0, %v238
  %240 = vmatprep.mubr.f32.mxu0 0.0
  %241 = vmatmul.mubr.f32.gmra.mrb[0].mxu0 %v57
  %v242 = vpop.f32.mrb[0].mxu0
  %v243 = vadd.f32 0.0, %v242
  %v244 = vpop.f32.mrb[0].mxu0
  %v245 = vadd.f32 0.0, %v244
  %246 = vmatprep.mubr.f32.mxu0 0.0
  %247 = vmatmul.mubr.f32.gmra.mrb[0].mxu0 %v60
  %v248 = vpop.f32.mrb[0].mxu0
  %v249 = vadd.f32 0.0, %v248
  %v250 = vpop.f32.mrb[0].mxu0
  %v251 = vadd.f32 0.0, %v250
  %252 = vdwg.mxu0
  %v253 = vmax.f32 %v136, 0.0
  %v254 = vmax.f32 %v138, 0.0
  %v255 = vmax.f32 %v142, 0.0
  %v256 = vmax.f32 %v144, 0.0
  %v257 = vmax.f32 %v148, 0.0
  %v258 = vmax.f32 %v150, 0.0
  %v259 = vmax.f32 %v154, 0.0
  %v260 = vmax.f32 %v156, 0.0
  %v261 = vmax.f32 %v231, 0.0
  %v262 = vmax.f32 %v233, 0.0
  %v263 = vmax.f32 %v237, 0.0
  %v264 = vmax.f32 %v239, 0.0
  %v265 = vmax.f32 %v243, 0.0
  %v266 = vmax.f32 %v245, 0.0
  %v267 = vmax.f32 %v249, 0.0
  %v268 = vmax.f32 %v251, 0.0
  %v269 = vadd.f32 %v253, %v254
  %270 = vadd.xlane.f32.xlu0 %v269
  %v271 = vpop.xlane.xlu0 %270
  %v272 = vadd.f32 %v255, %v256
  %273 = vadd.xlane.f32.xlu0 %v272
  %v274 = vpop.xlane.xlu0 %273
  %v275 = vadd.f32 %v257, %v258
  %276 = vadd.xlane.f32.xlu0 %v275
  %v277 = vpop.xlane.xlu0 %276
  %v278 = vadd.f32 %v259, %v260
  %279 = vadd.xlane.f32.xlu0 %v278
  %v280 = vpop.xlane.xlu0 %279
  %v281 = vadd.f32 %v261, %v262
  %282 = vadd.xlane.f32.xlu0 %v281
  %v283 = vpop.xlane.xlu0 %282
  %v284 = vadd.f32 %v263, %v264
  %285 = vadd.xlane.f32.xlu0 %v284
  %v286 = vpop.xlane.xlu0 %285
  %v287 = vadd.f32 %v265, %v266
  %288 = vadd.xlane.f32.xlu0 %v287
  %v289 = vpop.xlane.xlu0 %288
  %v290 = vadd.f32 %v267, %v268
  %291 = vadd.xlane.f32.xlu0 %v290
  %v292 = vpop.xlane.xlu0 %291
  %v293 = vrcp.pop 256.0
  %v294 = vmul.f32 %v271, %v293
  %v295 = vmul.f32 %v274, %v293
  %v296 = vmul.f32 %v277, %v293
  %v297 = vmul.f32 %v280, %v293
  %v298 = vmul.f32 %v283, %v293
  %v299 = vmul.f32 %v286, %v293
  %v300 = vmul.f32 %v289, %v293
  %v301 = vmul.f32 %v292, %v293
  %v302 = vld [vmem:[%s2] sm:$0xff]
  %v303 = vld [vmem:[%s2 + $0x8] sm:$0xff]
  %v304 = vld [vmem:[%s2 + $0x10] sm:$0xff]
  %v305 = vld [vmem:[%s2 + $0x18] sm:$0xff]
  %v314 = vlaneseq
  %v315 = vand.u32 %v314, 127
  %v316 = vlaneseq
  %v317 = vshrl.u32 %v316, 7
  %v318 = vsub.s32 %v315, %v317
  %v319 = vrot.slane %v294, %v318
  %v320 = vadd.s32 %v315, 4294967288
  %v321 = vlaneseq
  %v322 = vshrl.u32 %v321, 7
  %v323 = vsub.s32 %v320, %v322
  %v324 = vrot.slane %v295, %v323
  %vm325 = vcmask 130112
  %v326 = vsel %vm325, %v324, %v319
  %v327 = vadd.s32 %v315, 4294967280
  %v328 = vlaneseq
  %v329 = vshrl.u32 %v328, 7
  %v330 = vsub.s32 %v327, %v329
  %v331 = vrot.slane %v296, %v330
  %vm332 = vcmask 195712
  %v333 = vsel %vm332, %v331, %v326
  %v334 = vadd.s32 %v315, 4294967272
  %v335 = vlaneseq
  %v336 = vshrl.u32 %v335, 7
  %v337 = vsub.s32 %v334, %v336
  %v338 = vrot.slane %v297, %v337
  %vm339 = vcmask 261312
  %v340 = vsel %vm339, %v338, %v333
  %v341 = vlaneseq
  %v342 = vshrl.u32 %v341, 7
  %v343 = vsub.s32 %v315, %v342
  %v344 = vrot.slane %v298, %v343
  %v345 = vlaneseq
  %v346 = vshrl.u32 %v345, 7
  %v347 = vsub.s32 %v320, %v346
  %v348 = vrot.slane %v299, %v347
  %v349 = vsel %vm325, %v348, %v344
  %v350 = vlaneseq
  %v351 = vshrl.u32 %v350, 7
  %v352 = vsub.s32 %v327, %v351
  %v353 = vrot.slane %v300, %v352
  %v354 = vsel %vm332, %v353, %v349
  %v355 = vlaneseq
  %v356 = vshrl.u32 %v355, 7
  %v357 = vsub.s32 %v334, %v356
  %v358 = vrot.slane %v301, %v357
  %v359 = vsel %vm339, %v358, %v354
  %vm360 = vcmask 1041409
  %v361 = vsel %vm360, %v359, %v340
  %vm362 = vcmask 261120
  %v363 = vsel %vm362, %v361, 0
  %365 = vmatprep.subr.mxu0 0.0
  %366 = vmatpush1.msra.mxu0 %v302
  %367 = vmatprep.subr.mxu0 0.0
  %368 = vmatpush1.msra.mxu0 %v303
  %369 = vmatprep.subr.mxu0 0.0
  %370 = vmatpush1.msra.mxu0 %v304
  %371 = vmatprep.subr.mxu0 0.0
  %372 = vmatpush1.msra.mxu0 %v305
  %373 = vmatprep.subr.mxu0 0.0
  %374 = vmatpush1.msra.mxu0 0.0
  %375 = vmatprep.subr.mxu0 0.0
  %376 = vmatpush1.msra.mxu0 0.0
  %377 = vmatprep.subr.mxu0 0.0
  %378 = vmatpush1.msra.mxu0 0.0
  %379 = vmatprep.subr.mxu0 0.0
  %380 = vmatpush1.msra.mxu0 0.0
  %381 = vmatprep.subr.mxu0 0.0
  %382 = vmatpush1.msra.mxu0 0.0
  %383 = vmatprep.subr.mxu0 0.0
  %384 = vmatpush1.msra.mxu0 0.0
  %385 = vmatprep.subr.mxu0 0.0
  %386 = vmatpush1.msra.mxu0 0.0
  %387 = vmatprep.subr.mxu0 0.0
  %388 = vmatpush1.msra.mxu0 0.0
  %389 = vmatprep.subr.mxu0 0.0
  %390 = vmatpush1.msra.mxu0 0.0
  %391 = vmatprep.subr.mxu0 0.0
  %392 = vmatpush1.msra.mxu0 0.0
  %393 = vmatprep.subr.mxu0 0.0
  %394 = vmatpush1.msra.mxu0 0.0
  %395 = vmatprep.subr.mxu0 0.0
  %396 = vmatpush1.msra.mxu0 0.0
  %397 = vmatprep.subr.mxu0 0.0
  %398 = vmatpush1.msra.mxu0 0.0
  %399 = vmatprep.subr.mxu0 0.0
  %400 = vmatpush1.msra.mxu0 0.0
  %401 = vmatprep.subr.mxu0 0.0
  %402 = vmatpush1.msra.mxu0 0.0
  %403 = vmatprep.subr.mxu0 0.0
  %404 = vmatpush1.msra.mxu0 0.0
  %405 = vmatprep.subr.mxu0 0.0
  %406 = vmatpush1.msra.mxu0 0.0
  %407 = vmatprep.subr.mxu0 0.0
  %408 = vmatpush1.msra.mxu0 0.0
  %409 = vmatprep.subr.mxu0 0.0
  %410 = vmatpush1.msra.mxu0 0.0
  %411 = vmatprep.subr.mxu0 0.0
  %412 = vmatpush1.msra.mxu0 0.0
  %413 = vmatprep.subr.mxu0 0.0
  %414 = vmatpush1.msra.mxu0 0.0
  %415 = vmatprep.subr.mxu0 0.0
  %416 = vmatpush1.msra.mxu0 0.0
  %417 = vmatprep.subr.mxu0 0.0
  %418 = vmatpush1.msra.mxu0 0.0
  %419 = vmatprep.subr.mxu0 0.0
  %420 = vmatpush1.msra.mxu0 0.0
  %421 = vmatprep.subr.mxu0 0.0
  %422 = vmatpush1.msra.mxu0 0.0
  %423 = vmatprep.subr.mxu0 0.0
  %424 = vmatpush1.msra.mxu0 0.0
  %425 = vmatprep.subr.mxu0 0.0
  %426 = vmatpush1.msra.mxu0 0.0
  %427 = vmatprep.subr.mxu0 0.0
  %428 = vmatpush1.msra.mxu0 0.0
  %429 = vmatprep.mubr.f32.mxu0 0.0
  %430 = vmatmul.mubr.f32.gmra.mrb[0].mxu0 %v363
  %v431 = vpop.f32.mrb[0].mxu0
  %v432 = vadd.f32 0.0, %v431
  %v433 = vpop.f32.mrb[0].mxu0
  %434 = vdwg.mxu0
  %vm435 = vcmp.ge.f32.partialorder %v432, 0.0
  %v436 = vmul.f32 %v432, 0.01
  %v437 = vsel %vm435, %v432, %v436
  %v438 = vld [vmem:[%s3] sm:$0xff]
  %v439 = vld [vmem:[%s3 + $0x8] sm:$0xff]
  %v440 = vld [vmem:[%s3 + $0x10] sm:$0xff]
  %v441 = vld [vmem:[%s3 + $0x18] sm:$0xff]
  %v443 = vsel %vm362, %v437, 0
  %445 = vmatprep.subr.mxu0 0.0
  %446 = vmatpush1.msra.mxu0 %v438
  %447 = vmatprep.subr.mxu0 0.0
  %448 = vmatpush1.msra.mxu0 %v439
  %449 = vmatprep.subr.mxu0 0.0
  %450 = vmatpush1.msra.mxu0 %v440
  %451 = vmatprep.subr.mxu0 0.0
  %452 = vmatpush1.msra.mxu0 %v441
  %453 = vmatprep.subr.mxu0 0.0
  %454 = vmatpush1.msra.mxu0 0.0
  %455 = vmatprep.subr.mxu0 0.0
  %456 = vmatpush1.msra.mxu0 0.0
  %457 = vmatprep.subr.mxu0 0.0
  %458 = vmatpush1.msra.mxu0 0.0
  %459 = vmatprep.subr.mxu0 0.0
  %460 = vmatpush1.msra.mxu0 0.0
  %461 = vmatprep.subr.mxu0 0.0
  %462 = vmatpush1.msra.mxu0 0.0
  %463 = vmatprep.subr.mxu0 0.0
  %464 = vmatpush1.msra.mxu0 0.0
  %465 = vmatprep.subr.mxu0 0.0
  %466 = vmatpush1.msra.mxu0 0.0
  %467 = vmatprep.subr.mxu0 0.0
  %468 = vmatpush1.msra.mxu0 0.0
  %469 = vmatprep.subr.mxu0 0.0
  %470 = vmatpush1.msra.mxu0 0.0
  %471 = vmatprep.subr.mxu0 0.0
  %472 = vmatpush1.msra.mxu0 0.0
  %473 = vmatprep.subr.mxu0 0.0
  %474 = vmatpush1.msra.mxu0 0.0
  %475 = vmatprep.subr.mxu0 0.0
  %476 = vmatpush1.msra.mxu0 0.0
  %477 = vmatprep.subr.mxu0 0.0
  %478 = vmatpush1.msra.mxu0 0.0
  %479 = vmatprep.subr.mxu0 0.0
  %480 = vmatpush1.msra.mxu0 0.0
  %481 = vmatprep.subr.mxu0 0.0
  %482 = vmatpush1.msra.mxu0 0.0
  %483 = vmatprep.subr.mxu0 0.0
  %484 = vmatpush1.msra.mxu0 0.0
  %485 = vmatprep.subr.mxu0 0.0
  %486 = vmatpush1.msra.mxu0 0.0
  %487 = vmatprep.subr.mxu0 0.0
  %488 = vmatpush1.msra.mxu0 0.0
  %489 = vmatprep.subr.mxu0 0.0
  %490 = vmatpush1.msra.mxu0 0.0
  %491 = vmatprep.subr.mxu0 0.0
  %492 = vmatpush1.msra.mxu0 0.0
  %493 = vmatprep.subr.mxu0 0.0
  %494 = vmatpush1.msra.mxu0 0.0
  %495 = vmatprep.subr.mxu0 0.0
  %496 = vmatpush1.msra.mxu0 0.0
  %497 = vmatprep.subr.mxu0 0.0
  %498 = vmatpush1.msra.mxu0 0.0
  %499 = vmatprep.subr.mxu0 0.0
  %500 = vmatpush1.msra.mxu0 0.0
  %501 = vmatprep.subr.mxu0 0.0
  %502 = vmatpush1.msra.mxu0 0.0
  %503 = vmatprep.subr.mxu0 0.0
  %504 = vmatpush1.msra.mxu0 0.0
  %505 = vmatprep.subr.mxu0 0.0
  %506 = vmatpush1.msra.mxu0 0.0
  %507 = vmatprep.subr.mxu0 0.0
  %508 = vmatpush1.msra.mxu0 0.0
  %509 = vmatprep.mubr.f32.mxu0 0.0
  %510 = vmatmul.mubr.f32.gmra.mrb[0].mxu0 %v443
  %v511 = vpop.f32.mrb[0].mxu0
  %v512 = vadd.f32 0.0, %v511
  %v513 = vpop.f32.mrb[0].mxu0
  %514 = vdwg.mxu0
  %vm515 = vcmp.ge.f32.partialorder %v512, 0.0
  %v516 = vmul.f32 %v512, 0.01
  %v517 = vsel %vm515, %v512, %v516
  %v518 = vld [vmem:[%s4] sm:$0x1]
  %v520 = vlaneseq
  %v521 = vshrl.u32 %v520, 7
  %v522 = vsub.s32 0, %v521
  %v523 = vrot.slane %v518, %v522
  %v525 = vmul.f32 %v517, %v523
  %vm526 = vcmask 254976
  %v527 = vsel %vm526, %v525, 0.0
  %528 = vadd.xlane.f32.xlu0 %v527
  %v529 = vpop.xlane.xlu0 %528
  %v530 = vld [vmem:[#allocation2] sm:$0x1]
  %v532 = vlaneseq
  %v533 = vshrl.u32 %v532, 7
  %v534 = vsub.s32 0, %v533
  %v535 = vrot.slane %v530, %v534
  %v537 = vadd.f32 %v529, %v535
  %vm538 = vcmp.ge.f32.partialorder %v537, 0.0
  %v539 = vmul.f32 %v537, 0.01
  %v540 = vsel %vm538, %v537, %v539
  %vm541 = vcmask 1024
  %542 = vst.msk [vmem:[%s6] sm:$0x3] %vm541, %v540
  // Predicated region
  $region26: #{tpu_custom_call.1} parent=0 // pred_check
    _
  $region27: #{tpu_custom_call.1} parent=0 // pred_check_branch
    %544 = sbr.rel (0) target = $region29
  $region28: #{tpu_custom_call.1} parent=0 // pred_region
    _
  $region29: #{tpu_custom_call.1} parent=0 // pred_fallthru
    _
  // Predicated region
  $region30: #{tpu_custom_call.1} parent=0 // pred_check
    _
  $region31: #{tpu_custom_call.1} parent=0 // pred_check_branch
    %546 = sbr.rel (0) target = $region33
  $region32: #{tpu_custom_call.1} parent=0 // pred_region
    _
  $region33: #{tpu_custom_call.1} parent=0 // pred_fallthru
    _

</llo_original>
